<compile_context>
chip_gen: v6e
topology: v6e:2x2x1
jax: 0.10.0
libtpu: 0.0.40
codegen_flags: <defaults>
</compile_context>

<pallas_src>
import jax
import jax.numpy as jnp
from jax.experimental import pallas as pl
from jax.experimental.pallas import tpu as pltpu


def _round_up(x, m):
    return ((x + m - 1) // m) * m


def _sublane_multiple(dtype):
    itemsize = jnp.dtype(dtype).itemsize
    if itemsize >= 4:
        return 8
    if itemsize == 2:
        return 16
    return 32


# --------------------------- kernels ---------------------------------------

def _gemm_bias_kernel(x_ref, w_ref, b_ref, o_ref):
    # Single K tile: no accumulator read-modify-write, no pl.when bookkeeping.
    acc = jnp.dot(x_ref[...], w_ref[...], preferred_element_type=jnp.float32)
    o_ref[...] = (acc + b_ref[...].astype(jnp.float32)).astype(o_ref.dtype)


def _gemm_bias_acc_kernel(x_ref, w_ref, b_ref, o_ref, acc_ref):
    # Multi-tile K reduction: f32 VMEM accumulator resident across K steps.
    k = pl.program_id(2)

    @pl.when(k == 0)
    def _():
        acc_ref[...] = jnp.zeros_like(acc_ref)

    acc_ref[...] += jnp.dot(x_ref[...], w_ref[...],
                            preferred_element_type=jnp.float32)

    @pl.when(k == pl.num_programs(2) - 1)
    def _():
        o_ref[...] = (acc_ref[...] + b_ref[...].astype(jnp.float32)
                      ).astype(o_ref.dtype)


# --------------------------- prepare (run once) -----------------------------

def condensing_linear_prepare(model_weight, model_bias, drop_rate=0.5,
                              compute_dtype=None):
    """Replicates CondensingLinear.__init__ once at model-load time.

    Returns static params: kept-column index, pre-transposed / pre-padded
    selected weight (K, N), pre-padded f32 bias (1, N), and tiling metadata.
    Pass compute_dtype=jnp.bfloat16 to halve operand HBM traffic (fp8 on v7x
    would halve it again) -- kept at the model dtype here for exactness.
    """
    out_features, in_orig = model_weight.shape
    in_new = int(in_orig * drop_rate)          # matches the PyTorch module
    if compute_dtype is None:
        compute_dtype = model_weight.dtype

    col_sums = jnp.abs(model_weight).sum(axis=0)           # (F_orig,)
    index = jnp.argsort(col_sums)[in_orig - in_new:]       # kept columns

    # Selected GEMM operand: (K, N) = (F_new, F_out).  No zero-scatter fold.
    w_t = model_weight[:, index].T.astype(compute_dtype)   # (K, N)
    bias = model_bias.astype(jnp.float32)                   # (N,)

    K, N = int(w_t.shape[0]), int(w_t.shape[1])

    # --- N (lane) tiling: 128-multiples; prefer 256+ for the v6e/v7x MXU;
    #     split into >=2 N steps when possible so v7x's 2nd core has work.
    if N < 128:
        Np, tn = N, N                          # full-dim block is allowed
    else:
        Np = _round_up(N, 128)
        tn = Np
        for cand in (512, 384, 256, 128):
            if Np % cand == 0:
                tn = min(cand, Np)
                break
        if Np // tn == 1 and tn >= 256 and (tn // 2) % 128 == 0:
            tn = tn // 2                       # guarantee 2 parallel N steps

    # --- K (reduction) tiling: single tile whenever it comfortably fits VMEM.
    if K <= 1024:
        Kp, tk, multi_k = K, K, False
    else:
        tk = 1024
        Kp = _round_up(K, tk)
        multi_k = True

    w_pad = w_t
    if (Kp, Np) != (K, N):
        w_pad = jnp.pad(w_t, ((0, Kp - K), (0, Np - N)))
    b_pad = bias if Np == N else jnp.pad(bias, (0, Np - N))
    b_pad = b_pad.reshape(1, Np)

    return dict(index=index, w=w_pad, b=b_pad,
                K=K, N=N, Kp=Kp, Np=Np, tk=tk, tn=tn,
                multi_k=multi_k, compute_dtype=compute_dtype)


# --------------------------- forward ----------------------------------------

def condensing_linear_forward(x, params):
    """x: (B, F_orig).  Returns (B, F_out)."""
    index = params["index"]
    w, b = params["w"], params["b"]
    K, N = params["K"], params["N"]
    Kp, Np = params["Kp"], params["Np"]
    tk, tn = params["tk"], params["tn"]
    multi_k = params["multi_k"]
    cdt = params["compute_dtype"]

    B = x.shape[0]

    # Static feature gather in the wrapper (index_select equivalent).
    x_sel = x[:, index]
    if x_sel.dtype != cdt:
        x_sel = x_sel.astype(cdt)

    # --- M tiling: round to the dtype's sublane packing; grow toward VMEM.
    sub = _sublane_multiple(cdt)
    if B <= 512:
        tm = _round_up(B, sub)
        Mp = tm
    elif B <= 2048:
        tm = 256
        Mp = _round_up(B, tm)
    else:
        tm = 512
        Mp = _round_up(B, tm)

    if (Mp, Kp) != (B, K):
        x_sel = jnp.pad(x_sel, ((0, Mp - B), (0, Kp - K)))

    out_dtype = cdt
    itemsize = jnp.dtype(cdt).itemsize

    cost = pl.CostEstimate(
        flops=2 * B * N * K,
        transcendentals=0,
        bytes_accessed=int(x_sel.size * itemsize
                           + w.size * jnp.dtype(w.dtype).itemsize
                           + b.size * 4
                           + Mp * Np * jnp.dtype(out_dtype).itemsize))

    # Explicit VMEM budget (double-buffered inputs/outputs + f32 accumulator),
    # capped at 48 MiB so the same config stays safe on v7x's 64 MiB VMEM.
    vmem_est = (2 * (tm * tk + tk * tn) * itemsize
                + 2 * tm * tn * jnp.dtype(out_dtype).itemsize
                + tm * tn * 4
                + 2 * tn * 4)
    vmem_limit = int(min(48 << 20, max(32 << 20, 2 * vmem_est)))

    if multi_k:
        grid = (Mp // tm, Np // tn, Kp // tk)
        kernel = _gemm_bias_acc_kernel
        in_specs = [
            pl.BlockSpec((tm, tk), lambda i, j, k: (i, k)),
            pl.BlockSpec((tk, tn), lambda i, j, k: (k, j)),
            pl.BlockSpec((1, tn), lambda i, j, k: (0, j)),
        ]
        out_specs = pl.BlockSpec((tm, tn), lambda i, j, k: (i, j))
        scratch = [pltpu.VMEM((tm, tn), jnp.float32)]
        semantics = ("parallel", "parallel", "arbitrary")
    else:
        grid = (Mp // tm, Np // tn)
        kernel = _gemm_bias_kernel
        in_specs = [
            pl.BlockSpec((tm, Kp), lambda i, j: (i, 0)),
            pl.BlockSpec((Kp, tn), lambda i, j: (0, j)),
            pl.BlockSpec((1, tn), lambda i, j: (0, j)),
        ]
        out_specs = pl.BlockSpec((tm, tn), lambda i, j: (i, j))
        scratch = []
        semantics = ("parallel", "parallel")

    out = pl.pallas_call(
        kernel,
        out_shape=jax.ShapeDtypeStruct((Mp, Np), out_dtype),
        grid_spec=pltpu.PrefetchScalarGridSpec(
            num_scalar_prefetch=0,
            grid=grid,
            in_specs=in_specs,
            out_specs=out_specs,
            scratch_shapes=scratch,
        ),
        compiler_params=pltpu.CompilerParams(
            dimension_semantics=semantics,
            vmem_limit_bytes=vmem_limit),
        cost_estimate=cost,
    )(x_sel, w, b)

    if (Mp, Np) != (B, N):
        out = out[:B, :N]
    return out


# --------------------------- self-test ---------------------------------------

if __name__ == "__main__":
    batch = 8
    in_features_orig = 32
    out_features = 32
    drop_rate = 0.5

    key = jax.random.PRNGKey(0)
    k_w, k_b, k_x = jax.random.split(key, 3)

    # "model" = the original nn.Linear whose weights drive index selection.
    model_weight = jax.random.normal(k_w, (out_features, in_features_orig),
                                     jnp.float32)
    model_bias = jax.random.normal(k_b, (out_features,), jnp.float32)

    # One-time prepare (mirrors __init__; selected weight, pre-padded).
    params = condensing_linear_prepare(model_weight, model_bias, drop_rate)

    x = jax.random.normal(k_x, (batch, in_features_orig), jnp.float32)

    out = condensing_linear_forward(x, params)
    out = jax.block_until_ready(out)

    # Reference (plain JAX, same math as the PyTorch forward).
    index = params["index"]
    w_new = model_weight[:, index]
    ref = x[:, index] @ w_new.T + model_bias
    assert out.shape == (batch, out_features)
    assert jnp.allclose(out, ref, atol=1e-4, rtol=1e-4)

    print("KERNEL_OK")
</pallas_src>

<mosaic_0001>
module attributes {stable_mosaic.version = 11 : i64} {
  func.func @_gemm_bias_kernel(%arg0: i32, %arg1: i32, %arg2: memref<8x16xf32, #tpu.memory_space<vmem>>, %arg3: memref<16x32xf32, #tpu.memory_space<vmem>>, %arg4: memref<1x32xf32, #tpu.memory_space<vmem>>, %arg5: memref<8x32xf32, #tpu.memory_space<vmem>>) attributes {dimension_semantics = [#tpu.dimension_semantics<parallel>, #tpu.dimension_semantics<parallel>], iteration_bounds = array<i64: 1, 1>, scalar_prefetch = 0 : i64, scratch_operands = 0 : i64, tpu.core_type = #tpu.core_type<tc>, window_params = [{transform_indices = @transform_0, window_bounds = array<i64: 8, 16>}, {transform_indices = @transform_1, window_bounds = array<i64: 16, 32>}, {transform_indices = @transform_2, window_bounds = array<i64: 1, 32>}, {transform_indices = @transform_3, window_bounds = array<i64: 8, 32>}]} {
    %c0 = arith.constant 0 : index
    %c0_0 = arith.constant 0 : index
    %0 = vector.load %arg2[%c0, %c0_0] : memref<8x16xf32, #tpu.memory_space<vmem>>, vector<8x16xf32>
    %c0_1 = arith.constant 0 : index
    %c0_2 = arith.constant 0 : index
    %1 = vector.load %arg3[%c0_1, %c0_2] : memref<16x32xf32, #tpu.memory_space<vmem>>, vector<16x32xf32>
    %cst = arith.constant dense<0.000000e+00> : vector<8x32xf32>
    %2 = tpu.matmul %0, %1, %cst {dimension_numbers = #tpu.dot_dimension_numbers<[1], [0], [0], [1], [0, 0, 1, 1], [], []>} : vector<8x16xf32>, vector<16x32xf32>, vector<8x32xf32> -> vector<8x32xf32>
    %c0_3 = arith.constant 0 : index
    %c0_4 = arith.constant 0 : index
    %3 = vector.load %arg4[%c0_3, %c0_4] : memref<1x32xf32, #tpu.memory_space<vmem>>, vector<1x32xf32>
    %4 = vector.broadcast %3 : vector<1x32xf32> to vector<8x32xf32>
    %5 = arith.addf %2, %4 : vector<8x32xf32>
    %c0_5 = arith.constant 0 : index
    %c0_6 = arith.constant 0 : index
    %6 = vector.load %arg5[%c0_5, %c0_6] : memref<8x32xf32, #tpu.memory_space<vmem>>, vector<8x32xf32>
    tpu.vector_store %arg5[%c0_5, %c0_6], %5 {strides = array<i32>} : memref<8x32xf32, #tpu.memory_space<vmem>>, vector<8x32xf32>,
    return
  }
  func.func @transform_0(%arg0: i32, %arg1: i32) -> (i32, i32) {
    %c0_i32 = arith.constant 0 : i32
    %c0_i32_0 = arith.constant 0 : i32
    return %arg0, %c0_i32 : i32, i32
  }
  func.func @transform_1(%arg0: i32, %arg1: i32) -> (i32, i32) {
    %c0_i32 = arith.constant 0 : i32
    %c0_i32_0 = arith.constant 0 : i32
    return %c0_i32, %arg1 : i32, i32
  }
  func.func @transform_2(%arg0: i32, %arg1: i32) -> (i32, i32) {
    %c0_i32 = arith.constant 0 : i32
    %c0_i32_0 = arith.constant 0 : i32
    return %c0_i32, %arg1 : i32, i32
  }
  func.func @transform_3(%arg0: i32, %arg1: i32) -> (i32, i32) {
    %c0_i32 = arith.constant 0 : i32
    return %arg0, %arg1 : i32, i32
  }
}

</mosaic_0001>

<llo_original>
// kernel: tpu_custom_call.1
$region0: #{tpu_custom_call.1}
  #allocation0 [shape = 'u32[]', space=smem, size = 0x4, offset = 0x4, fixed_abs, tag = 'smem constant byte address 0x4 - core index']
  #allocation1 [shape = 'u32[144,128]{1,0:T(1,128)}', space=vmem, size = 0x12000, scoped, tag = 'internal scratch']
  %s0 = inlined_call_operand.hbm [shape: f32[8,16], index: 0, kind: input, shape index: {}]
  %s1 = inlined_call_operand.hbm [shape: f32[16,32], index: 1, kind: input, shape index: {}]
  %s2 = inlined_call_operand.vmem [shape: f32[1,32], index: 2, kind: input, shape index: {}]
  %s3 = inlined_call_operand.hbm [shape: f32[8,32], index: 3, kind: output, shape index: {}]
  %s4 = sld [smem:[#allocation0]]
  $region30: #{tpu_custom_call.1} parent=0
    _
  %s6 = ssub.s32 1, %s4
  %s7 = scalar_select 0, %s6, %s4
  $region1: #{tpu_custom_call.1} parent=0
    #allocation2 [shape = 'u8[4096]{0}', space=vmem, size = 0x1000, scoped, tag = 'input window, operand 0, single buffered']
    #allocation3 [shape = 's32[1]{0}', space=sflag, size = 0x4, scoped, tag = 'scoped memory for tpu_custom_call.1']
    #allocation4 [shape = 's32[1]{0}', space=sflag, size = 0x4, scoped, tag = 'scoped memory for tpu_custom_call.1']
    #allocation5 [shape = 'u8[8192]{0}', space=vmem, size = 0x2000, scoped, tag = 'input window, operand 1, single buffered']
    #allocation6 [shape = 's32[1]{0}', space=sflag, size = 0x4, scoped, tag = 'scoped memory for tpu_custom_call.1']
    #allocation7 [shape = 'u8[4096]{0}', space=vmem, size = 0x1000, scoped, tag = 'output window, operand 0, single buffered']
    %8 = vsyncpa [#allocation3], 0
    %9 = vsyncpa [#allocation6], 0
    %10 = vsyncpa [#allocation4], 0
    // Predicated region
    $region2: #{tpu_custom_call.1} parent=1 // pred_check
      _
    $region3: #{tpu_custom_call.1} parent=1 // pred_check_branch
      %12 = sbr.rel (0) target = $region5
    $region4: #{tpu_custom_call.1} parent=1 // pred_region
      %s14 = ssub.s32 128, 128
      %15 = vsyncadd [#allocation3], %s14
      %s17 = sshll.u32 [#allocation2], 4
      %s18 = int_to_ptr.vmem [resolvable:$true] %s17
      %20 = dma.hbm_to_vmem [thread:$0]  %s0, 128, %s18, [#allocation3]
    $region5: #{tpu_custom_call.1} parent=1 // pred_fallthru
      _
    // Predicated region
    $region6: #{tpu_custom_call.1} parent=1 // pred_check
      _
    $region7: #{tpu_custom_call.1} parent=1 // pred_check_branch
      %22 = sbr.rel (0) target = $region9
    $region8: #{tpu_custom_call.1} parent=1 // pred_region
      %s24 = ssub.s32 256, 256
      %25 = vsyncadd [#allocation6], %s24
      %s26 = sshll.u32 [#allocation5], 4
      %s27 = int_to_ptr.vmem [resolvable:$true] %s26
      %32 = dma.hbm_to_vmem [thread:$0]  %s1, 256, %s27, [#allocation6], 128, 128, 8
    $region9: #{tpu_custom_call.1} parent=1 // pred_fallthru
      _
    // Predicated region
    $region10: #{tpu_custom_call.1} parent=1 // pred_check
      _
    $region11: #{tpu_custom_call.1} parent=1 // pred_check_branch
      %34 = sbr.rel (0) target = $region13
    $region12: #{tpu_custom_call.1} parent=1 // pred_region
      _
    $region13: #{tpu_custom_call.1} parent=1 // pred_fallthru
      _
    // Predicated region
    $region14: #{tpu_custom_call.1} parent=1 // pred_check
      _
    $region15: #{tpu_custom_call.1} parent=1 // pred_check_branch
      %36 = sbr.rel (0) target = $region17
    $region16: #{tpu_custom_call.1} parent=1 // pred_region
      %37 = dma.done [#allocation3], 128
    $region17: #{tpu_custom_call.1} parent=1 // pred_fallthru
      _
    // Predicated region
    $region18: #{tpu_custom_call.1} parent=1 // pred_check
      _
    $region19: #{tpu_custom_call.1} parent=1 // pred_check_branch
      %39 = sbr.rel (0) target = $region21
    $region20: #{tpu_custom_call.1} parent=1 // pred_region
      %40 = dma.done [#allocation6], 256
    $region21: #{tpu_custom_call.1} parent=1 // pred_fallthru
      _
    %v41 = vld [vmem:[#allocation2] sm:$0xff]
    %v42 = vld [vmem:[#allocation5] sm:$0xff]
    %v43 = vld [vmem:[#allocation5 + $0x8] sm:$0xff]
    %v44 = vld [vmem:[%s2] sm:$0x1]
    %v46 = vlaneseq
    %v47 = vshrl.u32 %v46, 7
    %v48 = vsub.s32 0, %v47
    %v49 = vrot.slane %v44, %v48
    %vm51 = vcmask 130048
    %v53 = vsel %vm51, %v41, 0
    %55 = vmatprep.subr.mxu0 0.0
    %56 = vmatpush1.msra.mxu0 0.0
    %57 = vmatprep.subr.mxu0 0.0
    %58 = vmatpush1.msra.mxu0 0.0
    %59 = vmatprep.subr.mxu0 0.0
    %60 = vmatpush1.msra.mxu0 0.0
    %61 = vmatprep.subr.mxu0 0.0
    %62 = vmatpush1.msra.mxu0 0.0
    %63 = vmatprep.subr.mxu0 0.0
    %64 = vmatpush1.msra.mxu0 0.0
    %65 = vmatprep.subr.mxu0 0.0
    %66 = vmatpush1.msra.mxu0 0.0
    %67 = vmatprep.subr.mxu0 0.0
    %68 = vmatpush1.msra.mxu0 0.0
    %69 = vmatprep.subr.mxu0 0.0
    %70 = vmatpush1.msra.mxu0 0.0
    %71 = vmatprep.subr.mxu0 0.0
    %72 = vmatpush1.msra.mxu0 0.0
    %73 = vmatprep.subr.mxu0 0.0
    %74 = vmatpush1.msra.mxu0 0.0
    %75 = vmatprep.subr.mxu0 0.0
    %76 = vmatpush1.msra.mxu0 0.0
    %77 = vmatprep.subr.mxu0 0.0
    %78 = vmatpush1.msra.mxu0 0.0
    %79 = vmatprep.subr.mxu0 0.0
    %80 = vmatpush1.msra.mxu0 0.0
    %81 = vmatprep.subr.mxu0 0.0
    %82 = vmatpush1.msra.mxu0 0.0
    %83 = vmatprep.subr.mxu0 0.0
    %84 = vmatpush1.msra.mxu0 %v43
    %85 = vmatprep.subr.mxu0 0.0
    %86 = vmatpush1.msra.mxu0 %v42
    %87 = vmatprep.subr.mxu0 0.0
    %88 = vmatpush2.msra.mxu0 0.0
    %89 = vmatprep.subr.mxu0 0.0
    %90 = vmatpush2.msra.mxu0 0.0
    %91 = vmatprep.subr.mxu0 0.0
    %92 = vmatpush2.msra.mxu0 0.0
    %93 = vmatprep.subr.mxu0 0.0
    %94 = vmatpush2.msra.mxu0 0.0
    %95 = vmatprep.subr.mxu0 0.0
    %96 = vmatpush2.msra.mxu0 0.0
    %97 = vmatprep.subr.mxu0 0.0
    %98 = vmatpush2.msra.mxu0 0.0
    %99 = vmatprep.subr.mxu0 0.0
    %100 = vmatpush2.msra.mxu0 0.0
    %101 = vmatprep.subr.mxu0 0.0
    %102 = vmatpush2.msra.mxu0 0.0
    %103 = vmatprep.subr.mxu0 0.0
    %104 = vmatpush2.msra.mxu0 0.0
    %105 = vmatprep.subr.mxu0 0.0
    %106 = vmatpush2.msra.mxu0 0.0
    %107 = vmatprep.subr.mxu0 0.0
    %108 = vmatpush2.msra.mxu0 0.0
    %109 = vmatprep.subr.mxu0 0.0
    %110 = vmatpush2.msra.mxu0 0.0
    %111 = vmatprep.subr.mxu0 0.0
    %112 = vmatpush2.msra.mxu0 0.0
    %113 = vmatprep.subr.mxu0 0.0
    %114 = vmatpush2.msra.mxu0 0.0
    %115 = vmatprep.subr.mxu0 0.0
    %116 = vmatpush2.msra.mxu0 0.0
    %117 = vmatprep.subr.mxu0 0.0
    %118 = vmatpush2.msra.mxu0 0.0
    %119 = vmatprep.mubr.f32.mxu0 0.0
    %120 = vmatmul.mubr.f32.gmra.mxu0 %v53
    %v121 = vpop.f32.mrf.mxu0
    %v122 = vadd.f32 %v49, %v121
    %v123 = vpop.f32.mrf.mxu0
    %124 = vdwg.mxu0
    %vm125 = vcmask 261120
    %126 = vst.msk [vmem:[#allocation7] sm:$0xff] %vm125, %v122
    // Predicated region
    $region22: #{tpu_custom_call.1} parent=1 // pred_check
      _
    $region23: #{tpu_custom_call.1} parent=1 // pred_check_branch
      %128 = sbr.rel (0) target = $region25
    $region24: #{tpu_custom_call.1} parent=1 // pred_region
      %s130 = ssub.s32 128, 128
      %131 = vsyncadd [#allocation4], %s130
      %s133 = sshll.u32 [#allocation7], 4
      %s134 = int_to_ptr.vmem [resolvable:$true] %s133
      %136 = dma.vmem_to_hbm [thread:$0]  %s134, 128, %s3, [#allocation4]
    $region25: #{tpu_custom_call.1} parent=1 // pred_fallthru
      _
    // Predicated region
    $region26: #{tpu_custom_call.1} parent=1 // pred_check
      _
    $region27: #{tpu_custom_call.1} parent=1 // pred_check_branch
      %138 = sbr.rel (0) target = $region29
    $region28: #{tpu_custom_call.1} parent=1 // pred_region
      %139 = dma.done [#allocation4], 128
    $region29: #{tpu_custom_call.1} parent=1 // pred_fallthru
      _
    %140 = vsyncpa [#allocation3], 1
    %141 = vsyncpa [#allocation6], 1
    %142 = vsyncpa [#allocation4], 1

</llo_original>
